<compile_context>
chip_gen: v7x
topology: tpu7x:2x2x1
jax: 0.10.0
libtpu: 0.0.40
codegen_flags: <defaults>
</compile_context>

<pallas_src>
import functools
import itertools
import math

import numpy as np
import jax
import jax.numpy as jnp
from jax import lax
from jax.experimental import pallas as pl
from jax.experimental.pallas import tpu as pltpu


# ----------------- group-theory helpers (pure Python, trace-time) -----------------
def group_element(s, u, v, m=0):
    return np.array(
        [[(-1) ** m * math.cos(s * math.pi / 2),
          (-1) ** (m + 1) * math.sin(s * math.pi / 2), u],
         [math.sin(s * math.pi / 2), math.cos(s * math.pi / 2), v],
         [0.0, 0.0, 1.0]], dtype=np.float64)


def group_element_inverse(matrix, rot=True):
    topleft = matrix[0][0]
    angle = 0
    if np.allclose(topleft, 0.0, atol=1e-6, rtol=1e-6):
        if matrix[1][0] > 0:
            angle = 1
        elif matrix[1][0] < 0:
            angle = 3
    elif matrix[0][0] < 0:
        angle = 2
    else:
        angle = 0
    return (angle if rot else 0, float(matrix[0][2]), float(matrix[1][2]))


def build_indices(out_trans, in_trans, filter_size):
    """Replicates GConv2d.__init__ index-table construction."""
    ind1 = np.zeros((out_trans, in_trans, filter_size, filter_size), dtype=np.int32)
    ind2 = np.zeros_like(ind1)
    ind3 = np.zeros_like(ind1)
    half_x = filter_size / 2.0 - 0.5
    half_y = filter_size / 2.0 - 0.5
    for s_prime, s, u, v in itertools.product(range(out_trans), range(in_trans),
                                              range(filter_size), range(filter_size)):
        ref_prime = int(s_prime > 3)
        ref = int(s > 3)
        mat = (np.linalg.inv(group_element(s_prime, 0, 0, m=ref_prime))
               @ group_element(s, v - half_x, -1 * (u - half_y), m=ref))
        new_coords = group_element_inverse(mat, rot=in_trans > 1)
        _s = new_coords[0]
        _u = round(-1 * new_coords[2] + half_y)
        _v = round(new_coords[1] + half_x)
        ind1[s_prime, s, u, v] = _s
        ind2[s_prime, s, u, v] = _u
        ind3[s_prime, s, u, v] = _v
    return ind1, ind2, ind3


def transform_filters(filters, ind1, ind2, ind3, out_trans):
    """filters: (Co, Ci, in_trans, fs, fs) -> conv weight (Co*out_trans, Ci*in_trans, fs, fs)."""
    Co, Ci, St_in, fs, _ = filters.shape
    # TODO(synk): output-channel ordering of gcnn_functions_cpp.transform_filter is
    # assumed to be (out_channel, out_trans) x (in_channel, in_trans) (GrouPy convention).
    ft = filters[:, :, ind1, ind2, ind3]             # (Co, Ci, out_trans, in_trans, fs, fs)
    ft = ft.transpose(0, 2, 1, 3, 4, 5)              # (Co, out_trans, Ci, in_trans, fs, fs)
    return ft.reshape(Co * out_trans, Ci * St_in, fs, fs)


# ----------------------------- fused conv Pallas kernel ---------------------------
def _gconv_fused_kernel(x_ref, w_ref, o_ref, patches_ref, *, fs, Wp, Cin, Lout):
    """One batch image per grid step.

    x_ref       : (Cin, Lflat)  bf16 — zero-padded image, H/W flattened row-major.
    w_ref       : (Cout, K)     bf16 — K = fs*fs*Cin, columns ordered (kh, kw, ci).
    o_ref       : (Cout, Lout)  f32  — Lout = OH1*Wp (flat stride-1 output grid).
    patches_ref : (K, Lout)     bf16 — VMEM scratch holding the in-VMEM im2col.
    """
    # In-VMEM im2col: for flat output position j = oh*Wp + ow the receptive-field
    # sample (kh, kw, ci) lives at flat input position j + kh*Wp + kw, so each
    # patch row-block is just a shifted contiguous lane-slice of the input.
    for kh in range(fs):
        for kw in range(fs):
            row0 = (kh * fs + kw) * Cin
            off = kh * Wp + kw
            patches_ref[row0:row0 + Cin, :] = x_ref[:, off:off + Lout]
    # Single lane-dense MXU matmul: (Cout, K) @ (K, Lout) -> (Cout, Lout), f32 acc.
    o_ref[...] = jnp.dot(w_ref[...], patches_ref[...],
                         preferred_element_type=jnp.float32)


def gconv2d_forward(x, filters, ind1, ind2, ind3, out_trans, stride, padding):
    """x: (N, Cin_tot, H, W) f32 -> (N, Cout_tot, OH, OW) f32 (NCHW, as in the module)."""
    w_oihw = transform_filters(filters, ind1, ind2, ind3, out_trans)   # (Cout, Cin, fs, fs)
    Cout, Cin, fs, _ = w_oihw.shape
    N, Cin_x, H, W = x.shape
    assert Cin_x == Cin, (Cin_x, Cin)

    p = padding
    Hp, Wp = H + 2 * p, W + 2 * p
    OH1, OW1 = Hp - fs + 1, Wp - fs + 1        # stride-1 output extent
    K = fs * fs * Cin
    Lout = OH1 * Wp                            # flat stride-1 output grid (cols >= OW1 are discarded)
    Lflat = (Hp + 1) * Wp                      # +1 zero row keeps every shifted slice in-bounds

    # bf16 operands, f32 accumulation.  The cast + spatial pad fuse into one cheap
    # XLA pass; the fs*fs-expanded patch matrix never touches HBM.
    x_flat = jnp.pad(x.astype(jnp.bfloat16),
                     ((0, 0), (0, 0), (p, p + 1), (p, p))).reshape(N, Cin, Lflat)
    # Weight columns ordered (kh, kw, ci) to match the in-kernel patch-row layout.
    w_mat = w_oihw.transpose(0, 2, 3, 1).reshape(Cout, K).astype(jnp.bfloat16)

    # Explicit VMEM budget (double-buffered blocks + scratch), capped for v7x's 64 MiB.
    blk_bytes = 2 * (Cin * Lflat * 2 + Cout * K * 2 + Cout * Lout * 4) + K * Lout * 2
    vmem_limit = int(min(max(8 * blk_bytes, 16 * 2**20), 32 * 2**20))

    out_flat = pl.pallas_call(
        functools.partial(_gconv_fused_kernel, fs=fs, Wp=Wp, Cin=Cin, Lout=Lout),
        out_shape=jax.ShapeDtypeStruct((N, Cout, Lout), jnp.float32),
        grid_spec=pltpu.PrefetchScalarGridSpec(
            num_scalar_prefetch=0,
            grid=(N,),
            in_specs=[pl.BlockSpec((None, Cin, Lflat), lambda n: (n, 0, 0)),
                      pl.BlockSpec((Cout, K), lambda n: (0, 0))],   # stationary weight
            out_specs=pl.BlockSpec((None, Cout, Lout), lambda n: (n, 0, 0)),
            scratch_shapes=[pltpu.VMEM((K, Lout), jnp.bfloat16)]),
        compiler_params=pltpu.CompilerParams(
            dimension_semantics=("parallel",),           # batch shards across TensorCores
            vmem_limit_bytes=vmem_limit),
        cost_estimate=pl.CostEstimate(
            flops=2 * N * Cout * K * Lout,
            transcendentals=0,
            bytes_accessed=N * Cin * Lflat * 2 + Cout * K * 2 + N * Cout * Lout * 4),
    )(x_flat, w_mat)

    # Free reshape + contiguous column slice back to exact NCHW (no transpose pass).
    out = out_flat.reshape(N, Cout, OH1, Wp)[:, :, :, :OW1]
    if stride > 1:
        # TODO(synk): stride > 1 computes the stride-1 conv and subsamples in XLA;
        # a strided pl.ds fast path inside the kernel would avoid the wasted work.
        out = out[:, :, ::stride, ::stride]
    return out


# --------------------------------- demo / check -----------------------------------
if __name__ == "__main__":
    # GConv2d(in_channels=4, out_channels=4, filter_size=3, stride=1, padding=1,
    #         in_transformations=1, out_transformations=4, group='p4')
    N, H, W = 2, 16, 16
    in_channels, out_channels = 4, 4
    in_trans, out_trans = 1, 4
    fs, stride, padding = 3, 1, 1

    key = jax.random.PRNGKey(0)
    kx, kw = jax.random.split(key)

    # input is NCHW with Cin_total = in_channels * in_trans
    x = jax.random.normal(kx, (N, in_channels * in_trans, H, W), dtype=jnp.float32)

    # nn.init.kaiming_uniform_(mode='fan_in', nonlinearity='relu')
    fan_in = in_channels * in_trans * fs * fs
    bound = math.sqrt(2.0) * math.sqrt(3.0 / fan_in)
    filters = jax.random.uniform(
        kw, (out_channels, in_channels, in_trans, fs, fs),
        minval=-bound, maxval=bound, dtype=jnp.float32)

    ind1, ind2, ind3 = build_indices(out_trans, in_trans, fs)

    out = gconv2d_forward(x, filters, ind1, ind2, ind3, out_trans, stride, padding)
    out = jax.block_until_ready(out)

    # Reference: F.conv2d with the transformed filters, evaluated on the same
    # bf16-quantized operands the kernel consumes (f32 accumulation).
    w_ref = transform_filters(filters, ind1, ind2, ind3, out_trans)
    xq = x.astype(jnp.bfloat16).astype(jnp.float32)
    wq = w_ref.astype(jnp.bfloat16).astype(jnp.float32)
    ref = lax.conv_general_dilated(
        xq, wq, window_strides=(stride, stride),
        padding=[(padding, padding), (padding, padding)],
        dimension_numbers=("NCHW", "OIHW", "NCHW"))
    ref = jax.block_until_ready(ref)

    assert out.shape == (N, out_channels * out_trans, H, W), out.shape
    np.testing.assert_allclose(np.asarray(out), np.asarray(ref), atol=1e-4, rtol=1e-4)
    print("KERNEL_OK")
</pallas_src>

<mosaic_0001>
module attributes {stable_mosaic.version = 11 : i64} {
  func.func @_gconv_fused_kernel(%arg0: i32, %arg1: memref<1x4x342xbf16, #tpu.memory_space<vmem>>, %arg2: memref<16x36xbf16, #tpu.memory_space<vmem>>, %arg3: memref<1x16x288xf32, #tpu.memory_space<vmem>>, %arg4: memref<36x288xbf16, #tpu.memory_space<vmem>>) attributes {dimension_semantics = [#tpu.dimension_semantics<parallel>], iteration_bounds = array<i64: 2>, scalar_prefetch = 0 : i64, scratch_operands = 1 : i64, tpu.core_type = #tpu.core_type<tc>, window_params = [{transform_indices = @transform_0, window_bounds = array<i64: 1, 4, 342>}, {pipeline_mode = #tpu.pipeline_mode<synchronous>, transform_indices = @transform_1, window_bounds = array<i64: 16, 36>}, {transform_indices = @transform_2, window_bounds = array<i64: 1, 16, 288>}]} {
    %c0 = arith.constant 0 : index
    %c0_0 = arith.constant 0 : index
    %c0_1 = arith.constant 0 : index
    %0 = vector.load %arg1[%c0, %c0_0, %c0_1] : memref<1x4x342xbf16, #tpu.memory_space<vmem>>, vector<1x4x288xbf16>
    %1 = vector.shape_cast %0 : vector<1x4x288xbf16> to vector<4x288xbf16>
    %c0_2 = arith.constant 0 : index
    %c0_3 = arith.constant 0 : index
    %2 = vector.load %arg4[%c0_2, %c0_3] : memref<36x288xbf16, #tpu.memory_space<vmem>>, vector<4x288xbf16>
    tpu.vector_store %arg4[%c0_2, %c0_3], %1 {strides = array<i32>} : memref<36x288xbf16, #tpu.memory_space<vmem>>, vector<4x288xbf16>,
    %c0_4 = arith.constant 0 : index
    %c0_5 = arith.constant 0 : index
    %c1 = arith.constant 1 : index
    %3 = vector.load %arg1[%c0_4, %c0_5, %c1] : memref<1x4x342xbf16, #tpu.memory_space<vmem>>, vector<1x4x288xbf16>
    %4 = vector.shape_cast %3 : vector<1x4x288xbf16> to vector<4x288xbf16>
    %c4 = arith.constant 4 : index
    %c0_6 = arith.constant 0 : index
    %5 = vector.load %arg4[%c4, %c0_6] : memref<36x288xbf16, #tpu.memory_space<vmem>>, vector<4x288xbf16>
    tpu.vector_store %arg4[%c4, %c0_6], %4 {strides = array<i32>} : memref<36x288xbf16, #tpu.memory_space<vmem>>, vector<4x288xbf16>,
    %c0_7 = arith.constant 0 : index
    %c0_8 = arith.constant 0 : index
    %c2 = arith.constant 2 : index
    %6 = vector.load %arg1[%c0_7, %c0_8, %c2] : memref<1x4x342xbf16, #tpu.memory_space<vmem>>, vector<1x4x288xbf16>
    %7 = vector.shape_cast %6 : vector<1x4x288xbf16> to vector<4x288xbf16>
    %c8 = arith.constant 8 : index
    %c0_9 = arith.constant 0 : index
    %8 = vector.load %arg4[%c8, %c0_9] : memref<36x288xbf16, #tpu.memory_space<vmem>>, vector<4x288xbf16>
    tpu.vector_store %arg4[%c8, %c0_9], %7 {strides = array<i32>} : memref<36x288xbf16, #tpu.memory_space<vmem>>, vector<4x288xbf16>,
    %c0_10 = arith.constant 0 : index
    %c0_11 = arith.constant 0 : index
    %c18 = arith.constant 18 : index
    %9 = vector.load %arg1[%c0_10, %c0_11, %c18] : memref<1x4x342xbf16, #tpu.memory_space<vmem>>, vector<1x4x288xbf16>
    %10 = vector.shape_cast %9 : vector<1x4x288xbf16> to vector<4x288xbf16>
    %c12 = arith.constant 12 : index
    %c0_12 = arith.constant 0 : index
    %11 = vector.load %arg4[%c12, %c0_12] : memref<36x288xbf16, #tpu.memory_space<vmem>>, vector<4x288xbf16>
    tpu.vector_store %arg4[%c12, %c0_12], %10 {strides = array<i32>} : memref<36x288xbf16, #tpu.memory_space<vmem>>, vector<4x288xbf16>,
    %c0_13 = arith.constant 0 : index
    %c0_14 = arith.constant 0 : index
    %c19 = arith.constant 19 : index
    %12 = vector.load %arg1[%c0_13, %c0_14, %c19] : memref<1x4x342xbf16, #tpu.memory_space<vmem>>, vector<1x4x288xbf16>
    %13 = vector.shape_cast %12 : vector<1x4x288xbf16> to vector<4x288xbf16>
    %c16 = arith.constant 16 : index
    %c0_15 = arith.constant 0 : index
    %14 = vector.load %arg4[%c16, %c0_15] : memref<36x288xbf16, #tpu.memory_space<vmem>>, vector<4x288xbf16>
    tpu.vector_store %arg4[%c16, %c0_15], %13 {strides = array<i32>} : memref<36x288xbf16, #tpu.memory_space<vmem>>, vector<4x288xbf16>,
    %c0_16 = arith.constant 0 : index
    %c0_17 = arith.constant 0 : index
    %c20 = arith.constant 20 : index
    %15 = vector.load %arg1[%c0_16, %c0_17, %c20] : memref<1x4x342xbf16, #tpu.memory_space<vmem>>, vector<1x4x288xbf16>
    %16 = vector.shape_cast %15 : vector<1x4x288xbf16> to vector<4x288xbf16>
    %c20_18 = arith.constant 20 : index
    %c0_19 = arith.constant 0 : index
    %17 = vector.load %arg4[%c20_18, %c0_19] : memref<36x288xbf16, #tpu.memory_space<vmem>>, vector<4x288xbf16>
    tpu.vector_store %arg4[%c20_18, %c0_19], %16 {strides = array<i32>} : memref<36x288xbf16, #tpu.memory_space<vmem>>, vector<4x288xbf16>,
    %c0_20 = arith.constant 0 : index
    %c0_21 = arith.constant 0 : index
    %c36 = arith.constant 36 : index
    %18 = vector.load %arg1[%c0_20, %c0_21, %c36] : memref<1x4x342xbf16, #tpu.memory_space<vmem>>, vector<1x4x288xbf16>
    %19 = vector.shape_cast %18 : vector<1x4x288xbf16> to vector<4x288xbf16>
    %c24 = arith.constant 24 : index
    %c0_22 = arith.constant 0 : index
    %20 = vector.load %arg4[%c24, %c0_22] : memref<36x288xbf16, #tpu.memory_space<vmem>>, vector<4x288xbf16>
    tpu.vector_store %arg4[%c24, %c0_22], %19 {strides = array<i32>} : memref<36x288xbf16, #tpu.memory_space<vmem>>, vector<4x288xbf16>,
    %c0_23 = arith.constant 0 : index
    %c0_24 = arith.constant 0 : index
    %c37 = arith.constant 37 : index
    %21 = vector.load %arg1[%c0_23, %c0_24, %c37] : memref<1x4x342xbf16, #tpu.memory_space<vmem>>, vector<1x4x288xbf16>
    %22 = vector.shape_cast %21 : vector<1x4x288xbf16> to vector<4x288xbf16>
    %c28 = arith.constant 28 : index
    %c0_25 = arith.constant 0 : index
    %23 = vector.load %arg4[%c28, %c0_25] : memref<36x288xbf16, #tpu.memory_space<vmem>>, vector<4x288xbf16>
    tpu.vector_store %arg4[%c28, %c0_25], %22 {strides = array<i32>} : memref<36x288xbf16, #tpu.memory_space<vmem>>, vector<4x288xbf16>,
    %c0_26 = arith.constant 0 : index
    %c0_27 = arith.constant 0 : index
    %c38 = arith.constant 38 : index
    %24 = vector.load %arg1[%c0_26, %c0_27, %c38] : memref<1x4x342xbf16, #tpu.memory_space<vmem>>, vector<1x4x288xbf16>
    %25 = vector.shape_cast %24 : vector<1x4x288xbf16> to vector<4x288xbf16>
    %c32 = arith.constant 32 : index
    %c0_28 = arith.constant 0 : index
    %26 = vector.load %arg4[%c32, %c0_28] : memref<36x288xbf16, #tpu.memory_space<vmem>>, vector<4x288xbf16>
    tpu.vector_store %arg4[%c32, %c0_28], %25 {strides = array<i32>} : memref<36x288xbf16, #tpu.memory_space<vmem>>, vector<4x288xbf16>,
    %c0_29 = arith.constant 0 : index
    %c0_30 = arith.constant 0 : index
    %27 = vector.load %arg2[%c0_29, %c0_30] : memref<16x36xbf16, #tpu.memory_space<vmem>>, vector<16x36xbf16>
    %c0_31 = arith.constant 0 : index
    %c0_32 = arith.constant 0 : index
    %28 = vector.load %arg4[%c0_31, %c0_32] : memref<36x288xbf16, #tpu.memory_space<vmem>>, vector<36x288xbf16>
    %cst = arith.constant dense<0.000000e+00> : vector<16x288xf32>
    %29 = tpu.matmul %27, %28, %cst {dimension_numbers = #tpu.dot_dimension_numbers<[1], [0], [0], [1], [0, 0, 1, 1], [], []>} : vector<16x36xbf16>, vector<36x288xbf16>, vector<16x288xf32> -> vector<16x288xf32>
    %c0_33 = arith.constant 0 : index
    %c0_34 = arith.constant 0 : index
    %c0_35 = arith.constant 0 : index
    %30 = vector.load %arg3[%c0_33, %c0_34, %c0_35] : memref<1x16x288xf32, #tpu.memory_space<vmem>>, vector<1x16x288xf32>
    %31 = vector.shape_cast %30 : vector<1x16x288xf32> to vector<16x288xf32>
    %32 = vector.shape_cast %29 : vector<16x288xf32> to vector<1x16x288xf32>
    tpu.vector_store %arg3[%c0_33, %c0_34, %c0_35], %32 {strides = array<i32>} : memref<1x16x288xf32, #tpu.memory_space<vmem>>, vector<1x16x288xf32>,
    return
  }
  func.func @transform_0(%arg0: i32) -> (i32, i32, i32) {
    %c0_i32 = arith.constant 0 : i32
    %c0_i32_0 = arith.constant 0 : i32
    %c0_i32_1 = arith.constant 0 : i32
    return %arg0, %c0_i32, %c0_i32_0 : i32, i32, i32
  }
  func.func @transform_1(%arg0: i32) -> (i32, i32) {
    %c0_i32 = arith.constant 0 : i32
    %c0_i32_0 = arith.constant 0 : i32
    %c0_i32_1 = arith.constant 0 : i32
    return %c0_i32, %c0_i32_0 : i32, i32
  }
  func.func @transform_2(%arg0: i32) -> (i32, i32, i32) {
    %c0_i32 = arith.constant 0 : i32
    %c0_i32_0 = arith.constant 0 : i32
    %c0_i32_1 = arith.constant 0 : i32
    return %arg0, %c0_i32, %c0_i32_0 : i32, i32, i32
  }
}

</mosaic_0001>

<llo_original>
// kernel: tpu_custom_call.1
$region0: #{tpu_custom_call.1}
  #allocation0 [shape = 'u32[]', space=smem, size = 0x4, offset = 0x4, fixed_abs, tag = 'smem constant byte address 0x4 - core index']
  #allocation1 [shape = 'u32[144,128]{1,0:T(1,128)}', space=vmem, size = 0x12000, scoped, tag = 'internal scratch']
  #allocation2 [shape = 'bf16[36,288]{1,0:T(8,128)(2,1)}', space=vmem, size = 0x7800, scoped, tag = 'scratch operand']
  %s0 = inlined_call_operand.hbm [shape: bf16[2,4,342], index: 0, kind: input, shape index: {}]
  %s1 = inlined_call_operand.hbm [shape: bf16[16,36], index: 1, kind: input, shape index: {}]
  %s2 = inlined_call_operand.hbm [shape: f32[2,16,288], index: 2, kind: output, shape index: {}]
  %s3 = sld [smem:[#allocation0]]
  $region49: #{tpu_custom_call.1} parent=0
    _
  %s5 = ssub.s32 1, %s3
  %s6 = scalar_select 0, %s5, %s3
  $region1: #{tpu_custom_call.1} parent=0
    #allocation3 [shape = 'u8[6144]{0}', space=vmem, size = 0x1800, scoped, tag = 'input window, operand 0']
    #allocation4 [shape = 's32[2]{0}', space=sflag, size = 0x8, scoped, tag = 'scoped memory for tpu_custom_call.1']
    #allocation5 [shape = 's32[2]{0}', space=sflag, size = 0x8, scoped, tag = 'scoped memory for tpu_custom_call.1']
    #allocation6 [shape = 'u8[4096]{0}', space=vmem, size = 0x1000, scoped, tag = 'input window, operand 1, single buffered']
    #allocation7 [shape = 's32[1]{0}', space=sflag, size = 0x4, scoped, tag = 'scoped memory for tpu_custom_call.1']
    #allocation8 [shape = 'u8[49152]{0}', space=vmem, size = 0xc000, scoped, tag = 'output window, operand 0']
    %7 = vsyncpa [#allocation4], 0
    %s8 = scalar_lea.sflag [#allocation4], 1
    %9 = vsyncpa %s8, 0
    %10 = vsyncpa [#allocation7], 0
    %11 = vsyncpa [#allocation5], 0
    %s12 = scalar_lea.sflag [#allocation5], 1
    %13 = vsyncpa %s12, 0
    loop: start=0, step=1, limit=4
    $region2: #{tpu_custom_call.1} parent=1 // loop_pre_header
      _
    $region3: #{tpu_custom_call.1} parent=1 // loop_header
      %s15 = sphi 0, %s19
      %p16 = scmp.ge.s32.totalorder %s15, 4
      %s25 = sphi 0, %s27
      %s28 = sphi 0, %s25
      %s29 = sphi 0, %s28
      %s45 = sphi 0, %s29
      %s49 = sphi 0, %s49
      %s51 = sphi 0, %s49
      %s52 = sphi 0, %s51
      %s66 = sphi 0, %s52
      %s72 = sphi 0, %s74
      %s75 = sphi 0, %s72
      %s76 = sphi 0, %s75
      %s92 = sphi 0, %s76
    $region4: #{tpu_custom_call.1} parent=1 // loop_header_branch
      %18 = sbr.rel (%p16) target = $region8
    $region5: #{tpu_custom_call.1} parent=1 // loop_body
      %s20 = ssub.s32 %s15, 1
      %s21 = ssub.s32 %s15, 2
      %s22 = sadd.s32 %s15, 1
      %s23 = ssub.s32 %s15, %s22
      %p24 = scmp.eq.s32.totalorder %s23, 0
      %s26 = sadd.s32 %s25, 1
      %s27 = scalar_select %p24, %s25, %s26
      %p30 = pneg %p24
      %p31 = scmp.eq.s32.totalorder %s15, 1
      %p32 = por %p30, %p31
      %p33 = scmp.ne.s32.totalorder %s25, %s28
      %p34 = scmp.eq.s32.totalorder %s15, 0
      %p35 = por %p33, %p34
      %p36 = scmp.ne.s32.totalorder %s25, %s28
      %p37 = scmp.eq.s32.totalorder %s20, 1
      %p38 = por %p36, %p37
      %p39 = scmp.ne.s32.totalorder %s28, %s29
      %p40 = scmp.eq.s32.totalorder %s20, 0
      %p41 = por %p39, %p40
      %p42 = scmp.ne.s32.totalorder %s28, %s29
      %p43 = scmp.eq.s32.totalorder %s21, 1
      %p44 = por %p42, %p43
      %p46 = scmp.ne.s32.totalorder %s29, %s45
      %p47 = scmp.eq.s32.totalorder %s21, 0
      %p48 = por %p46, %p47
      %s50 = sadd.s32 %s49, 1
      %p53 = scmp.eq.s32.totalorder %s15, 1
      %p54 = scmp.ne.s32.totalorder %s49, %s51
      %p55 = scmp.eq.s32.totalorder %s15, 0
      %p56 = por %p54, %p55
      %p57 = scmp.ne.s32.totalorder %s49, %s51
      %p58 = scmp.eq.s32.totalorder %s20, 1
      %p59 = por %p57, %p58
      %p60 = scmp.ne.s32.totalorder %s51, %s52
      %p61 = scmp.eq.s32.totalorder %s20, 0
      %p62 = por %p60, %p61
      %p63 = scmp.ne.s32.totalorder %s51, %s52
      %p64 = scmp.eq.s32.totalorder %s21, 1
      %p65 = por %p63, %p64
      %p67 = scmp.ne.s32.totalorder %s52, %s66
      %p68 = scmp.eq.s32.totalorder %s21, 0
      %p69 = por %p67, %p68
      %s70 = ssub.s32 %s15, %s22
      %p71 = scmp.eq.s32.totalorder %s70, 0
      %s73 = sadd.s32 %s72, 1
      %s74 = scalar_select %p71, %s72, %s73
      %p77 = pneg %p71
      %p78 = scmp.eq.s32.totalorder %s15, 1
      %p79 = por %p77, %p78
      %p80 = scmp.ne.s32.totalorder %s72, %s75
      %p81 = scmp.eq.s32.totalorder %s15, 0
      %p82 = por %p80, %p81
      %p83 = scmp.ne.s32.totalorder %s72, %s75
      %p84 = scmp.eq.s32.totalorder %s20, 1
      %p85 = por %p83, %p84
      %p86 = scmp.ne.s32.totalorder %s75, %s76
      %p87 = scmp.eq.s32.totalorder %s20, 0
      %p88 = por %p86, %p87
      %p89 = scmp.ne.s32.totalorder %s75, %s76
      %p90 = scmp.eq.s32.totalorder %s21, 1
      %p91 = por %p89, %p90
      %p93 = scmp.ne.s32.totalorder %s76, %s92
      %p94 = scmp.eq.s32.totalorder %s21, 0
      %p95 = por %p93, %p94
      %p96 = scmp.le.s32.totalorder 1, %s15
      %p97 = scmp.lt.s32.totalorder %s15, 3
      %p98 = pnand %p96, %p97
      %p99 = pneg %p98
      // Predicated region
      $region9: #{tpu_custom_call.1} parent=5 // pred_check
        _
      $region10: #{tpu_custom_call.1} parent=5 // pred_check_branch
        %101 = sbr.rel (%p98) target = $region12
      $region11: #{tpu_custom_call.1} parent=5 // pred_region
        %s102 = ssub.s32 %s15, 1
        // Predicated region
        $region13: #{tpu_custom_call.1} parent=11 // pred_check
          %p103 = pneg %p62
        $region14: #{tpu_custom_call.1} parent=11 // pred_check_branch
          %105 = sbr.rel (%p103) target = $region16
        $region15: #{tpu_custom_call.1} parent=11 // pred_region
          %s107 = ssub.s32 128, 128
          %108 = vsyncadd [#allocation7], %s107
          %s109 = sshll.u32 [#allocation6], 4
          %s110 = int_to_ptr.vmem [resolvable:$true] %s109
          %115 = dma.hbm_to_vmem [thread:$0]  %s1, 128, %s110, [#allocation7], 64, 64, 4
        $region16: #{tpu_custom_call.1} parent=11 // pred_fallthru
          _
      $region12: #{tpu_custom_call.1} parent=5 // pred_fallthru
        _
      %p116 = scmp.lt.s32.totalorder %s15, 2
      // Predicated region
      $region17: #{tpu_custom_call.1} parent=5 // pred_check
        %p117 = pneg %p116
      $region18: #{tpu_custom_call.1} parent=5 // pred_check_branch
        %119 = sbr.rel (%p117) target = $region20
      $region19: #{tpu_custom_call.1} parent=5 // pred_region
        // Predicated region
        $region21: #{tpu_custom_call.1} parent=19 // pred_check
          %p120 = pneg %p35
        $region22: #{tpu_custom_call.1} parent=19 // pred_check_branch
          %122 = sbr.rel (%p120) target = $region24
        $region23: #{tpu_custom_call.1} parent=19 // pred_region
          %s123 = sand.u32 %s25, 1
          %s124 = scalar_lea.sflag [#allocation4], %s123
          %s125 = sand.u32 %s25, 1
          %s126 = smul.addr %s125, 6
          %s127 = scalar_lea.vmem [#allocation3], %s126
          %s129 = ssub.s32 96, 96
          %130 = vsyncadd %s124, %s129
          %s131 = smul.addr %s15, 3
          %s132 = smul.addr %s131, 32
          %s133 = scalar_lea.hbm %s0, %s132
          %s135 = sshll.u32 %s127, 4
          %s136 = int_to_ptr.vmem [resolvable:$true] %s135
          %138 = dma.hbm_to_vmem [thread:$0]  %s133, 96, %s136, %s124
        $region24: #{tpu_custom_call.1} parent=19 // pred_fallthru
          _
      $region20: #{tpu_custom_call.1} parent=5 // pred_fallthru
        _
      %p139 = scmp.le.s32.totalorder 1, %s15
      %p140 = scmp.lt.s32.totalorder %s15, 3
      %p141 = pnand %p139, %p140
      %p142 = pneg %p141
      // Predicated region
      $region25: #{tpu_custom_call.1} parent=5 // pred_check
        _
      $region26: #{tpu_custom_call.1} parent=5 // pred_check_branch
        %144 = sbr.rel (%p141) target = $region28
      $region27: #{tpu_custom_call.1} parent=5 // pred_region
        %s145 = ssub.s32 %s15, 1
        %s146 = sand.u32 %s28, 1
        %s147 = scalar_lea.sflag [#allocation4], %s146
        %s148 = sand.u32 %s28, 1
        %s149 = smul.addr %s148, 6
        %s150 = scalar_lea.vmem [#allocation3], %s149
        // Predicated region
        $region29: #{tpu_custom_call.1} parent=27 // pred_check
          %p151 = pneg %p41
        $region30: #{tpu_custom_call.1} parent=27 // pred_check_branch
          %153 = sbr.rel (%p151) target = $region32
        $region31: #{tpu_custom_call.1} parent=27 // pred_region
          %154 = dma.done %s147, 96
        $region32: #{tpu_custom_call.1} parent=27 // pred_fallthru
          _
        // Predicated region
        $region33: #{tpu_custom_call.1} parent=27 // pred_check
          %p155 = pneg %p62
        $region34: #{tpu_custom_call.1} parent=27 // pred_check_branch
          %157 = sbr.rel (%p155) target = $region36
        $region35: #{tpu_custom_call.1} parent=27 // pred_region
          %158 = dma.done [#allocation7], 128
        $region36: #{tpu_custom_call.1} parent=27 // pred_fallthru
          _
        %s159 = sand.u32 %s28, 1
        %s160 = scalar_lea.sflag [#allocation4], %s159
        %s161 = sand.u32 %s28, 1
        %s162 = smul.addr %s161, 6
        %s163 = scalar_lea.vmem [#allocation3], %s162
        %p164 = pneg %p41
        %p165 = pneg %p38
        %p166 = pneg %p62
        %p167 = pneg %p59
        %p168 = pneg %p88
        %p169 = pneg %p85
        %s170 = sand.u32 %s75, 1
        %s171 = scalar_lea.sflag [#allocation5], %s170
        %s172 = sand.u32 %s75, 1
        %s173 = smul.addr %s172, 48
        %s174 = scalar_lea.vmem [#allocation8], %s173
        %v176 = vld [vmem:[%s150] sm:$0x3f]
        %v178 = vcombine.high %v176, %v176
        %v180 = vunpack.c.l.s4 1983009808
        %v181 = vunpack.c.0.s8 %v180
        %v182 = vlaneseq
        %v183 = vshrl.u32 %v182, 7
        %v184 = vsub.s32 %v181, %v183
        %v185 = vrot.slane %v176, %v184
        %v187 = vunpack.c.l.s4 1983009808
        %v188 = vunpack.c.0.s8 %v187
        %v189 = vlaneseq
        %v190 = vshrl.u32 %v189, 7
        %v191 = vsub.s32 %v188, %v190
        %v192 = vrot.slane %v178, %v191
        %195 = vst [vmem:[#allocation2] sm:$0x33] %v185
        %vm196 = vcmask 254976
        %197 = vst.msk [vmem:[#allocation2 + $0x8] sm:$0x3] %vm196, %v192
        %v198 = vld [vmem:[%s150] sm:$0x3f]
        %v200 = vcombine.low %v198, %v198
        %v202 = vunpack.c.l.s4 1983009808
        %v203 = vunpack.c.0.s8 %v202
        %v204 = vlaneseq
        %v205 = vshrl.u32 %v204, 7
        %v206 = vsub.s32 %v203, %v205
        %v207 = vrot.slane %v200, %v206
        %v209 = vunpack.c.l.s4 1983009808
        %v210 = vunpack.c.0.s8 %v209
        %v211 = vlaneseq
        %v212 = vshrl.u32 %v211, 7
        %v213 = vsub.s32 %v210, %v212
        %v214 = vrot.slane %v198, %v213
        %215 = vrot.lane.b32.xlu0 %v207, 127
        %v216 = vpop.permute.xlu0 %215
        %217 = vrot.lane.b32.xlu0 %v214, 127
        %v218 = vpop.permute.xlu0 %217
        %v219 = vrot.slane %v216, 4
        %v220 = vrot.slane %v218, 4
        %vm221 = vcmask 1043456
        %v222 = vsel %vm221, %v219, %v220
        %vm223 = vcmask 1039360
        %v224 = vsel %vm223, %v216, %v222
        %227 = vst [vmem:[#allocation2] sm:$0xcc] %v224
        %vm228 = vcmask 257026
        %229 = vst.msk [vmem:[#allocation2 + $0x8] sm:$0xc] %vm228, %v218
        %v230 = vld [vmem:[%s150] sm:$0x3f]
        %v232 = vcombine.high %v230, %v230
        %v234 = vunpack.c.l.s4 1983009808
        %v235 = vunpack.c.0.s8 %v234
        %v236 = vlaneseq
        %v237 = vshrl.u32 %v236, 7
        %v238 = vsub.s32 %v235, %v237
        %v239 = vrot.slane %v230, %v238
        %v241 = vunpack.c.l.s4 1983009808
        %v242 = vunpack.c.0.s8 %v241
        %v243 = vlaneseq
        %v244 = vshrl.u32 %v243, 7
        %v245 = vsub.s32 %v242, %v244
        %v246 = vrot.slane %v232, %v245
        %247 = vrot.lane.b32.xlu0 %v239, 126
        %v248 = vpop.permute.xlu0 %247
        %249 = vrot.lane.b32.xlu0 %v246, 126
        %v250 = vpop.permute.xlu0 %249
        %v251 = vrot.slane %v248, 4
        %v252 = vrot.slane %v250, 4
        %v253 = vsel %vm221, %v251, %v252
        %vm254 = vcmask 1031168
        %v255 = vsel %vm254, %v248, %v253
        %258 = vst [vmem:[#allocation2 + $0xc] sm:$0x33] %v255
        %259 = vst.msk [vmem:[#allocation2 + $0x14] sm:$0x3] %vm196, %v250
        %v260 = vld [vmem:[%s150] sm:$0x3f]
        %v262 = vcombine.low %v260, %v260
        %v264 = vunpack.c.l.s4 1983009808
        %v265 = vunpack.c.0.s8 %v264
        %v266 = vlaneseq
        %v267 = vshrl.u32 %v266, 7
        %v268 = vsub.s32 %v265, %v267
        %v269 = vrot.slane %v262, %v268
        %v271 = vunpack.c.l.s4 1983009808
        %v272 = vunpack.c.0.s8 %v271
        %v273 = vlaneseq
        %v274 = vshrl.u32 %v273, 7
        %v275 = vsub.s32 %v272, %v274
        %v276 = vrot.slane %v260, %v275
        %277 = vrot.lane.b32.xlu0 %v269, 110
        %v278 = vpop.permute.xlu0 %277
        %279 = vrot.lane.b32.xlu0 %v276, 110
        %v280 = vpop.permute.xlu0 %279
        %v281 = vrot.slane %v278, 4
        %v282 = vrot.slane %v280, 4
        %v283 = vsel %vm221, %v281, %v282
        %vm284 = vcmask 900096
        %v285 = vsel %vm284, %v278, %v283
        %288 = vst [vmem:[#allocation2 + $0xc] sm:$0xcc] %v285
        %289 = vst.msk [vmem:[#allocation2 + $0x14] sm:$0xc] %vm228, %v280
        %v290 = vld [vmem:[%s150] sm:$0x3f]
        %v292 = vcombine.high %v290, %v290
        %v294 = vunpack.c.l.s4 1983009808
        %v295 = vunpack.c.0.s8 %v294
        %v296 = vlaneseq
        %v297 = vshrl.u32 %v296, 7
        %v298 = vsub.s32 %v295, %v297
        %v299 = vrot.slane %v290, %v298
        %v301 = vunpack.c.l.s4 1983009808
        %v302 = vunpack.c.0.s8 %v301
        %v303 = vlaneseq
        %v304 = vshrl.u32 %v303, 7
        %v305 = vsub.s32 %v302, %v304
        %v306 = vrot.slane %v292, %v305
        %307 = vrot.lane.b32.xlu0 %v299, 109
        %v308 = vpop.permute.xlu0 %307
        %309 = vrot.lane.b32.xlu0 %v306, 109
        %v310 = vpop.permute.xlu0 %309
        %v311 = vrot.slane %v308, 4
        %v312 = vrot.slane %v310, 4
        %v313 = vsel %vm221, %v311, %v312
        %vm314 = vcmask 891904
        %v315 = vsel %vm314, %v308, %v313
        %318 = vst [vmem:[#allocation2 + $0x18] sm:$0x33] %v315
        %319 = vst.msk [vmem:[#allocation2 + $0x20] sm:$0x3] %vm196, %v310
        %v320 = vld [vmem:[%s150] sm:$0x3f]
        %v322 = vcombine.low %v320, %v320
        %v324 = vunpack.c.l.s4 1983009808
        %v325 = vunpack.c.0.s8 %v324
        %v326 = vlaneseq
        %v327 = vshrl.u32 %v326, 7
        %v328 = vsub.s32 %v325, %v327
        %v329 = vrot.slane %v322, %v328
        %v331 = vunpack.c.l.s4 1983009808
        %v332 = vunpack.c.0.s8 %v331
        %v333 = vlaneseq
        %v334 = vshrl.u32 %v333, 7
        %v335 = vsub.s32 %v332, %v334
        %v336 = vrot.slane %v320, %v335
        %337 = vrot.lane.b32.xlu0 %v329, 108
        %v338 = vpop.permute.xlu0 %337
        %339 = vrot.lane.b32.xlu0 %v336, 108
        %v340 = vpop.permute.xlu0 %339
        %v341 = vrot.slane %v338, 4
        %v342 = vrot.slane %v340, 4
        %v343 = vsel %vm221, %v341, %v342
        %vm344 = vcmask 883712
        %v345 = vsel %vm344, %v338, %v343
        %348 = vst [vmem:[#allocation2 + $0x18] sm:$0xcc] %v345
        %349 = vst.msk [vmem:[#allocation2 + $0x20] sm:$0xc] %vm228, %v340
        %v350 = vld [vmem:[%s150] sm:$0x3f]
        %v352 = vcombine.high %v350, %v350
        %v354 = vunpack.c.l.s4 1983009808
        %v355 = vunpack.c.0.s8 %v354
        %v356 = vlaneseq
        %v357 = vshrl.u32 %v356, 7
        %v358 = vsub.s32 %v355, %v357
        %v359 = vrot.slane %v350, %v358
        %v361 = vunpack.c.l.s4 1983009808
        %v362 = vunpack.c.0.s8 %v361
        %v363 = vlaneseq
        %v364 = vshrl.u32 %v363, 7
        %v365 = vsub.s32 %v362, %v364
        %v366 = vrot.slane %v352, %v365
        %367 = vrot.lane.b32.xlu0 %v359, 92
        %v368 = vpop.permute.xlu0 %367
        %369 = vrot.lane.b32.xlu0 %v366, 92
        %v370 = vpop.permute.xlu0 %369
        %v371 = vrot.slane %v368, 4
        %v372 = vrot.slane %v370, 4
        %v373 = vsel %vm221, %v371, %v372
        %vm374 = vcmask 752640
        %v375 = vsel %vm374, %v368, %v373
        %378 = vst [vmem:[#allocation2 + $0x24] sm:$0x33] %v375
        %379 = vst.msk [vmem:[#allocation2 + $0x2c] sm:$0x3] %vm196, %v370
        %v380 = vld [vmem:[%s150] sm:$0x3f]
        %v382 = vcombine.low %v380, %v380
        %v384 = vunpack.c.l.s4 1983009808
        %v385 = vunpack.c.0.s8 %v384
        %v386 = vlaneseq
        %v387 = vshrl.u32 %v386, 7
        %v388 = vsub.s32 %v385, %v387
        %v389 = vrot.slane %v382, %v388
        %v391 = vunpack.c.l.s4 1983009808
        %v392 = vunpack.c.0.s8 %v391
        %v393 = vlaneseq
        %v394 = vshrl.u32 %v393, 7
        %v395 = vsub.s32 %v392, %v394
        %v396 = vrot.slane %v380, %v395
        %397 = vrot.lane.b32.xlu0 %v389, 91
        %v398 = vpop.permute.xlu0 %397
        %399 = vrot.lane.b32.xlu0 %v396, 91
        %v400 = vpop.permute.xlu0 %399
        %v401 = vrot.slane %v398, 4
        %v402 = vrot.slane %v400, 4
        %v403 = vsel %vm221, %v401, %v402
        %vm404 = vcmask 744448
        %v405 = vsel %vm404, %v398, %v403
        %408 = vst [vmem:[#allocation2 + $0x24] sm:$0xcc] %v405
        %409 = vst.msk [vmem:[#allocation2 + $0x2c] sm:$0xc] %vm228, %v400
        %v410 = vld [vmem:[%s150] sm:$0x3f]
        %v412 = vcombine.high %v410, %v410
        %v414 = vunpack.c.l.s4 1983009808
        %v415 = vunpack.c.0.s8 %v414
        %v416 = vlaneseq
        %v417 = vshrl.u32 %v416, 7
        %v418 = vsub.s32 %v415, %v417
        %v419 = vrot.slane %v410, %v418
        %v421 = vunpack.c.l.s4 1983009808
        %v422 = vunpack.c.0.s8 %v421
        %v423 = vlaneseq
        %v424 = vshrl.u32 %v423, 7
        %v425 = vsub.s32 %v422, %v424
        %v426 = vrot.slane %v412, %v425
        %427 = vrot.lane.b32.xlu0 %v419, 90
        %v428 = vpop.permute.xlu0 %427
        %429 = vrot.lane.b32.xlu0 %v426, 90
        %v430 = vpop.permute.xlu0 %429
        %v431 = vrot.slane %v428, 4
        %v432 = vrot.slane %v430, 4
        %v433 = vsel %vm221, %v431, %v432
        %vm434 = vcmask 736256
        %v435 = vsel %vm434, %v428, %v433
        %438 = vst [vmem:[#allocation2 + $0x30] sm:$0x33] %v435
        %439 = vst.msk [vmem:[#allocation2 + $0x38] sm:$0x3] %vm196, %v430
        %v440 = vld [vmem:[#allocation6] sm:$0xf]
        %v441 = vld [vmem:[#allocation6 + $0x4] sm:$0xf]
        %v442 = vld [vmem:[#allocation2] sm:$0xff]
        %v443 = vld [vmem:[#allocation2 + $0x8] sm:$0xf]
        %v444 = vld [vmem:[#allocation2 + $0xc] sm:$0xff]
        %v445 = vld [vmem:[#allocation2 + $0x14] sm:$0xf]
        %v446 = vld [vmem:[#allocation2 + $0x18] sm:$0xff]
        %v447 = vld [vmem:[#allocation2 + $0x20] sm:$0xf]
        %v448 = vld [vmem:[#allocation2 + $0x24] sm:$0xff]
        %v449 = vld [vmem:[#allocation2 + $0x2c] sm:$0xf]
        %v450 = vld [vmem:[#allocation2 + $0x30] sm:$0x33]
        %v451 = vld [vmem:[#allocation2 + $0x38] sm:$0x3]
        %v454 = vunpack.c.l.b16 %v440
        %v455 = vunpack.c.l.b16 %v441
        %v456 = vpack.c.b16 %v455, %v454
        %v467 = vunpack.c.l.b16 %v442
        %v468 = vunpack.c.h.b16 %v442
        %v469 = vunpack.c.l.b16 %v443
        %v470 = vunpack.c.l.b16 %v444
        %v471 = vunpack.c.h.b16 %v444
        %v472 = vunpack.c.l.b16 %v445
        %v473 = vunpack.c.l.b16 %v446
        %v474 = vunpack.c.h.b16 %v446
        %v475 = vunpack.c.l.b16 %v447
        %v476 = vunpack.c.l.b16 %v448
        %v477 = vunpack.c.h.b16 %v448
        %v478 = vunpack.c.l.b16 %v449
        %v479 = vunpack.c.l.b16 %v450
        %v480 = vunpack.c.h.b16 %v450
        %v481 = vunpack.c.l.b16 %v451
        %v482 = vpack.c.b16 %v470, %v467
        %v483 = vpack.c.b16 %v471, %v468
        %v484 = vpack.c.b16 %v472, %v469
        %v485 = vpack.c.b16 %v476, %v473
        %v486 = vpack.c.b16 %v477, %v474
        %v487 = vpack.c.b16 %v478, %v475
        %v488 = vpack.c.b16 %v479, %v479
        %v489 = vpack.c.b16 %v480, %v480
        %v490 = vpack.c.b16 %v481, %v481
        %vm497 = vcmask 293888
        %v499 = vsel %vm497, %v456, 0
        %vm501 = vcmask 1041408
        %v503 = vsel %vm501, %v488, 0
        %v506 = vsel %vm501, %v489, 0
        %v509 = vsel %vm501, %v490, 0
        %511 = vmatprep.subr.bf16.mxu0 %v483
        %512 = vmatpush1.bf16.msra.mxu0 %v482
        %513 = vmatprep.subr.bf16.mxu0 %v486
        %514 = vmatpush1.bf16.msra.mxu0 %v485
        %515 = vmatprep.subr.bf16.mxu0 %v506
        %516 = vmatpush1.bf16.msra.mxu0 %v503
        %517 = vmatprep.subr.bf16.mxu0 0
        %518 = vmatpush1.bf16.msra.mxu0 0
        %519 = vmatprep.subr.bf16.mxu0 0
        %520 = vmatpush1.bf16.msra.mxu0 0
        %521 = vmatprep.subr.bf16.mxu0 0
        %522 = vmatpush1.bf16.msra.mxu0 0
        %523 = vmatprep.subr.bf16.mxu0 0
        %524 = vmatpush1.bf16.msra.mxu0 0
        %525 = vmatprep.subr.bf16.mxu0 0
        %526 = vmatpush1.bf16.msra.mxu0 0
        %527 = vmatprep.subr.bf16.mxu0 0
        %528 = vmatpush1.bf16.msra.mxu0 0
        %529 = vmatprep.subr.bf16.mxu0 0
        %530 = vmatpush1.bf16.msra.mxu0 0
        %531 = vmatprep.subr.bf16.mxu0 0
        %532 = vmatpush1.bf16.msra.mxu0 0
        %533 = vmatprep.subr.bf16.mxu0 0
        %534 = vmatpush1.bf16.msra.mxu0 0
        %535 = vmatprep.subr.bf16.mxu0 0
        %536 = vmatpush1.bf16.msra.mxu0 0
        %537 = vmatprep.subr.bf16.mxu0 0
        %538 = vmatpush1.bf16.msra.mxu0 0
        %539 = vmatprep.subr.bf16.mxu0 0
        %540 = vmatpush1.bf16.msra.mxu0 0
        %541 = vmatprep.subr.bf16.mxu0 0
        %542 = vmatpush1.bf16.msra.mxu0 0
        %543 = vmatprep.mubr.bf16.mxu0 0
        %544 = vmatmul.mubr.bf16.gmra.mrb[0].mxu0 %v499
        %v545 = vpop.f32.mrb[0].mxu0
        %v546 = vadd.f32 0.0, %v545
        %v547 = vpop.f32.mrb[0].mxu0
        %v548 = vadd.f32 0.0, %v547
        %v549 = vpop.f32.mrb[0].mxu0
        %v550 = vadd.f32 0.0, %v549
        %v551 = vpop.f32.mrb[0].mxu0
        %v552 = vadd.f32 0.0, %v551
        %553 = vdwg.mxu0
        %554 = vmatprep.subr.bf16.mxu0 0
        %555 = vmatpush1.bf16.msra.mxu0 %v484
        %556 = vmatprep.subr.bf16.mxu0 0
        %557 = vmatpush1.bf16.msra.mxu0 %v487
        %558 = vmatprep.subr.bf16.mxu0 0
        %559 = vmatpush1.bf16.msra.mxu0 %v509
        %560 = vmatprep.subr.bf16.mxu0 0
        %561 = vmatpush1.bf16.msra.mxu0 0
        %562 = vmatprep.subr.bf16.mxu0 0
        %563 = vmatpush1.bf16.msra.mxu0 0
        %564 = vmatprep.subr.bf16.mxu0 0
        %565 = vmatpush1.bf16.msra.mxu0 0
        %566 = vmatprep.subr.bf16.mxu0 0
        %567 = vmatpush1.bf16.msra.mxu0 0
        %568 = vmatprep.subr.bf16.mxu0 0
        %569 = vmatpush1.bf16.msra.mxu0 0
        %570 = vmatprep.subr.bf16.mxu0 0
        %571 = vmatpush1.bf16.msra.mxu0 0
        %572 = vmatprep.subr.bf16.mxu0 0
        %573 = vmatpush1.bf16.msra.mxu0 0
        %574 = vmatprep.subr.bf16.mxu0 0
        %575 = vmatpush1.bf16.msra.mxu0 0
        %576 = vmatprep.subr.bf16.mxu0 0
        %577 = vmatpush1.bf16.msra.mxu0 0
        %578 = vmatprep.subr.bf16.mxu0 0
        %579 = vmatpush1.bf16.msra.mxu0 0
        %580 = vmatprep.subr.bf16.mxu0 0
        %581 = vmatpush1.bf16.msra.mxu0 0
        %582 = vmatprep.subr.bf16.mxu0 0
        %583 = vmatpush1.bf16.msra.mxu0 0
        %584 = vmatprep.subr.bf16.mxu0 0
        %585 = vmatpush1.bf16.msra.mxu0 0
        %586 = vmatprep.mubr.bf16.mxu0 0
        %587 = vmatmul.mubr.bf16.gmra.mrb[0].mxu0 %v499
        %v588 = vpop.f32.mrb[0].mxu0
        %v589 = vadd.f32 0.0, %v588
        %v590 = vpop.f32.mrb[0].mxu0
        %v591 = vpop.f32.mrb[0].mxu0
        %v592 = vadd.f32 0.0, %v591
        %v593 = vpop.f32.mrb[0].mxu0
        %594 = vdwg.mxu0
        %595 = vst [vmem:[%s174] sm:$0xff] %v546
        %596 = vst [vmem:[%s174 + $0x8] sm:$0xff] %v548
        %vm597 = vcmask 261120
        %598 = vst.msk [vmem:[%s174 + $0x10] sm:$0xff] %vm597, %v589
        %599 = vst [vmem:[%s174 + $0x18] sm:$0xff] %v550
        %600 = vst [vmem:[%s174 + $0x20] sm:$0xff] %v552
        %601 = vst.msk [vmem:[%s174 + $0x28] sm:$0xff] %vm597, %v592
        %s602 = sand.u32 %s75, 1
        %s603 = scalar_lea.sflag [#allocation5], %s602
        %s604 = sand.u32 %s75, 1
        %s605 = smul.addr %s604, 48
        %s606 = scalar_lea.vmem [#allocation8], %s605
        // Predicated region
        $region37: #{tpu_custom_call.1} parent=27 // pred_check
          %p607 = pneg %p85
        $region38: #{tpu_custom_call.1} parent=27 // pred_check_branch
          %609 = sbr.rel (%p607) target = $region40
        $region39: #{tpu_custom_call.1} parent=27 // pred_region
          %s611 = ssub.s32 768, 768
          %612 = vsyncadd %s603, %s611
          %s613 = smul.addr %s20, 6
          %s614 = smul.addr %s613, 128
          %s615 = scalar_lea.hbm %s2, %s614
          %s616 = sshll.u32 %s606, 4
          %s617 = int_to_ptr.vmem [resolvable:$true] %s616
          %622 = dma.vmem_to_hbm [thread:$0]  %s617, 768, %s615, %s603, 384, 384, 24
        $region40: #{tpu_custom_call.1} parent=27 // pred_fallthru
          _
      $region28: #{tpu_custom_call.1} parent=5 // pred_fallthru
        _
      %p623 = scmp.le.s32.totalorder 2, %s15
      // Predicated region
      $region41: #{tpu_custom_call.1} parent=5 // pred_check
        %p624 = pneg %p623
      $region42: #{tpu_custom_call.1} parent=5 // pred_check_branch
        %626 = sbr.rel (%p624) target = $region44
      $region43: #{tpu_custom_call.1} parent=5 // pred_region
        %s627 = ssub.s32 %s15, 2
        // Predicated region
        $region45: #{tpu_custom_call.1} parent=43 // pred_check
          %p628 = pneg %p91
        $region46: #{tpu_custom_call.1} parent=43 // pred_check_branch
          %630 = sbr.rel (%p628) target = $region48
        $region47: #{tpu_custom_call.1} parent=43 // pred_region
          %s631 = sand.u32 %s76, 1
          %s632 = scalar_lea.sflag [#allocation5], %s631
          %s633 = sand.u32 %s76, 1
          %s634 = smul.addr %s633, 48
          %s635 = scalar_lea.vmem [#allocation8], %s634
          %636 = dma.done %s632, 768
        $region48: #{tpu_custom_call.1} parent=43 // pred_fallthru
          _
      $region44: #{tpu_custom_call.1} parent=5 // pred_fallthru
        _
    $region6: #{tpu_custom_call.1} parent=1 // loop_footer
      %s19 = sadd.s32 1, %s15
    $region7: #{tpu_custom_call.1} parent=1 // loop_footer_branch
      %14 = sbr.rel target = $region3
    $region8: #{tpu_custom_call.1} parent=1 // loop_exit
      _
    %637 = vsyncpa [#allocation4], 1
    %s638 = scalar_lea.sflag [#allocation4], 1
    %639 = vsyncpa %s638, 1
    %640 = vsyncpa [#allocation7], 1
    %641 = vsyncpa [#allocation5], 1
    %s642 = scalar_lea.sflag [#allocation5], 1
    %643 = vsyncpa %s642, 1

</llo_original>
